<compile_context>
chip_gen: v6e
topology: v6e:2x2x1
jax: 0.10.0
libtpu: 0.0.40
codegen_flags: <defaults>
</compile_context>

<pallas_src>
import numpy as np
import jax
import jax.numpy as jnp
from jax import lax
from jax.experimental import pallas as pl
from jax.experimental.pallas import tpu as pltpu


def _tpu_kind():
    try:
        return jax.devices()[0].device_kind.lower()
    except Exception:
        return ""


def _exp_dtype():
    # bf16 EUP exponentials only on v6e / v7x (v5e and older have no bf16 VPU/EUP path).
    kind = _tpu_kind()
    if ("v6" in kind) or ("v7" in kind) or ("7x" in kind):
        return jnp.bfloat16
    return jnp.float32


def _vmem_limit_bytes():
    kind = _tpu_kind()
    if ("v5" in kind) or ("v6" in kind):
        return 64 * 1024 * 1024          # 128 MiB physical -> generous scoped limit
    return 48 * 1024 * 1024              # v7x: 64 MiB/TC physical, keep pipeline headroom


def _pick_token_tile(N, requested=None, target=2048):
    if requested is not None and N % requested == 0 and (requested % 8 == 0 or requested == N):
        return requested
    if N <= target or N % 8 != 0:
        return N
    t = target - (target % 8)
    while t >= 8:
        if N % t == 0:
            return t
        t -= 8
    return N


def _make_context_kernel(hidden, inv_hw, exp_dtype):
    """Pass 1: online key-softmax over tokens + per-head context accumulation."""
    def kernel(x_ref, w_kv_ref, mask_ref, ctx_ref, m_sc, l_sc, acc_sc):
        t = pl.program_id(1)

        @pl.when(t == 0)
        def _():
            m_sc[...] = jnp.full_like(m_sc, -jnp.inf)
            l_sc[...] = jnp.zeros_like(l_sc)
            acc_sc[...] = jnp.zeros_like(acc_sc)

        x = x_ref[0]                                                  # (TN, C) bf16
        kv = jnp.dot(x, w_kv_ref[...],
                     preferred_element_type=jnp.float32)              # (TN, 2*hidden) f32
        k = kv[:, :hidden]
        v = kv[:, hidden:].astype(jnp.bfloat16)                       # keep only a bf16 copy live

        # ---- online (flash-style) softmax over the token axis, per channel -------------
        m_old = m_sc[...]                                             # (1, hidden) f32
        m_new = jnp.maximum(m_old, jnp.max(k, axis=0, keepdims=True))
        alpha = jnp.exp(m_old - m_new)                                # (1, hidden) f32
        ek = jnp.exp((k - m_new).astype(exp_dtype))                   # (TN, hidden)
        l_sc[...] = alpha * l_sc[...] + jnp.sum(ek.astype(jnp.float32),
                                                axis=0, keepdims=True)
        # unnormalized context: contract the token axis of K and V directly on the MXU
        # (transposed-LHS dot_general -> no explicit (hidden, N) transpose / relayout)
        part = lax.dot_general(ek.astype(jnp.bfloat16), v,
                               (((0,), (0,)), ((), ())),
                               preferred_element_type=jnp.float32)     # (hidden, hidden)
        acc_sc[...] = acc_sc[...] * jnp.transpose(alpha) + part
        m_sc[...] = m_new

        @pl.when(t == pl.num_programs(1) - 1)
        def _():
            # fold the key-softmax denominator and the v/(H*W) factor into the context
            row_scale = jnp.transpose(pl.reciprocal(l_sc[...], approx=False) * inv_hw)
            ctx = acc_sc[...] * row_scale                              # (hidden, hidden) f32
            # keep only within-head (block-diagonal) channel pairs
            ctx_ref[0] = (ctx * mask_ref[...].astype(jnp.float32)).astype(ctx_ref.dtype)

    return kernel


def _make_output_kernel(scale, exp_dtype, eps=1e-5):
    """Pass 2: Q softmax, attention vs. context, out-proj + bias, LayerNorm2D."""
    def kernel(x_ref, w_q_ref, ctx_ref, mask_ref, w_o_ref, affine_ref, out_ref):
        x = x_ref[0]                                                  # (TN, C) bf16
        q = jnp.dot(x, w_q_ref[...],
                    preferred_element_type=jnp.float32)                # (TN, hidden) f32

        # per-token softmax over the dim_head channels of each head.  Shift by the
        # per-token GLOBAL max: constant within each head, so the softmax is unchanged.
        mq = jnp.max(q, axis=-1, keepdims=True)
        eq = jnp.exp((q - mq).astype(exp_dtype))                       # (TN, hidden)
        # per-head denominators broadcast back to all channels with ONE masked matmul
        qden = jnp.dot(eq.astype(jnp.bfloat16), mask_ref[...],
                       preferred_element_type=jnp.float32)             # (TN, hidden)
        q_n = eq.astype(jnp.float32) * (pl.reciprocal(qden, approx=False) * scale)

        # linear attention output against the precomputed per-head context
        attn = jnp.dot(q_n.astype(jnp.bfloat16), ctx_ref[0],
                       preferred_element_type=jnp.float32)             # (TN, hidden)

        # to_out: 1x1 conv with bias + LayerNorm2D over channels (two-pass, f32 stats)
        r = jnp.dot(attn.astype(jnp.bfloat16), w_o_ref[...],
                    preferred_element_type=jnp.float32) + affine_ref[0:1, :]
        mean = jnp.mean(r, axis=-1, keepdims=True)
        cent = r - mean
        var = jnp.mean(cent * cent, axis=-1, keepdims=True)
        y = cent * lax.rsqrt(var + eps) * affine_ref[1:2, :]
        out_ref[0] = y.astype(out_ref.dtype)

    return kernel


def plane_aware_linear_attention_2d(x, params, heads=4, dim_head=32, num_planes=3,
                                    token_tile=None):
    """x: (b*num_planes, dim, H, W) NCHW f32 -> (b*num_planes, dim, H, W) f32."""
    B, C, H, W = x.shape
    assert B % num_planes == 0
    b_real = B // num_planes
    hidden = heads * dim_head
    N = num_planes * H * W
    tn = _pick_token_tile(N, token_tile)
    n_tiles = N // tn
    exp_dtype = _exp_dtype()
    vmem_limit = _vmem_limit_bytes()
    inv_hw = 1.0 / (H * W)
    scale = dim_head ** -0.5

    # glue: channel-last bf16; fold the planes of each real batch element into one token
    # axis.  TODO(synk): in a channels-last bf16 model these NCHW<->NHWC transposes (and
    # the final f32 cast) disappear; they are kept only to match the PyTorch NCHW API.
    x_k = jnp.transpose(x.reshape(b_real, num_planes, C, H, W), (0, 1, 3, 4, 2))
    x_k = x_k.reshape(b_real, N, C).astype(jnp.bfloat16)

    w_qkv = params["w_qkv"].astype(jnp.bfloat16)             # (C, 3*hidden) = Conv2d 1x1 W^T
    w_q = w_qkv[:, :hidden]                                  # (C, hidden)
    w_kv = w_qkv[:, hidden:]                                 # (C, 2*hidden)
    w_out = params["w_out"].astype(jnp.bfloat16)             # (hidden, C)
    affine = jnp.concatenate([params["b_out"], params["g"]], 0).astype(jnp.float32)  # (2, C)
    head_id = jnp.arange(hidden) // dim_head
    head_mask = (head_id[:, None] == head_id[None, :]).astype(jnp.bfloat16)  # (hidden, hidden)

    # ---- pass 1: per-batch per-head context = softmax_n(K)^T @ (V / (H*W)) --------------
    ctx_cost = pl.CostEstimate(
        flops=2 * b_real * N * (C * 2 * hidden + hidden * hidden),
        transcendentals=b_real * N * hidden,
        bytes_accessed=x_k.size * 2 + b_real * hidden * hidden * 2
                       + (w_kv.size + head_mask.size) * 2)
    ctx = pl.pallas_call(
        _make_context_kernel(hidden, inv_hw, exp_dtype),
        out_shape=jax.ShapeDtypeStruct((b_real, hidden, hidden), jnp.bfloat16),
        grid=(b_real, n_tiles),
        in_specs=[
            pl.BlockSpec((1, tn, C), lambda b, t: (b, t, 0)),        # token tile
            pl.BlockSpec((C, 2 * hidden), lambda b, t: (0, 0)),      # fused K/V weight
            pl.BlockSpec((hidden, hidden), lambda b, t: (0, 0)),     # head block mask
        ],
        out_specs=pl.BlockSpec((1, hidden, hidden), lambda b, t: (b, 0, 0)),
        scratch_shapes=[
            pltpu.VMEM((1, hidden), jnp.float32),        # running per-channel max
            pltpu.VMEM((1, hidden), jnp.float32),        # running per-channel denom
            pltpu.VMEM((hidden, hidden), jnp.float32),   # context accumulator
        ],
        compiler_params=pltpu.CompilerParams(
            dimension_semantics=("parallel", "arbitrary"),
            vmem_limit_bytes=vmem_limit),
        cost_estimate=ctx_cost,
    )(x_k, w_kv, head_mask)

    # ---- pass 2: per token-tile Q softmax, attention, out-proj + LayerNorm --------------
    out_cost = pl.CostEstimate(
        flops=2 * b_real * N * (C * hidden + 2 * hidden * hidden + hidden * C),
        transcendentals=b_real * N * hidden,
        bytes_accessed=x_k.size * 2 + b_real * N * C * 2
                       + (w_q.size + w_out.size + head_mask.size + ctx.size) * 2
                       + affine.size * 4)
    out = pl.pallas_call(
        _make_output_kernel(scale, exp_dtype),
        out_shape=jax.ShapeDtypeStruct((b_real, N, C), jnp.bfloat16),  # bf16 HBM writeback
        grid=(b_real, n_tiles),
        in_specs=[
            pl.BlockSpec((1, tn, C), lambda b, t: (b, t, 0)),          # token tile
            pl.BlockSpec((C, hidden), lambda b, t: (0, 0)),            # Q weight
            pl.BlockSpec((1, hidden, hidden), lambda b, t: (b, 0, 0)), # per-batch context
            pl.BlockSpec((hidden, hidden), lambda b, t: (0, 0)),       # head block mask
            pl.BlockSpec((hidden, C), lambda b, t: (0, 0)),            # output projection
            pl.BlockSpec((2, C), lambda b, t: (0, 0)),                 # packed [bias; LN gain]
        ],
        out_specs=pl.BlockSpec((1, tn, C), lambda b, t: (b, t, 0)),
        compiler_params=pltpu.CompilerParams(
            dimension_semantics=("parallel", "parallel"),              # both axes megacore-splittable
            vmem_limit_bytes=vmem_limit),
        cost_estimate=out_cost,
    )(x_k, w_q, ctx, head_mask, w_out, affine)

    # TODO(synk): with dim=64 the (tn, C) HBM tiles are half a lane wide (masked vst);
    # packing the output as (b, N*C//128, 128) would be lane-dense at the cost of an
    # in-kernel relayout -- left out pending a measurement.
    out = out.reshape(b_real, num_planes, H, W, C)
    out = jnp.transpose(out, (0, 1, 4, 2, 3)).reshape(B, C, H, W)
    return out.astype(jnp.float32)


def reference(x, params, heads=4, dim_head=32, num_planes=3, eps=1e-5):
    """Pure-JAX f32 reproduction of the PyTorch forward (for the correctness check)."""
    B, C, H, W = x.shape
    b = B // num_planes
    hidden = heads * dim_head
    scale = dim_head ** -0.5

    xc = jnp.transpose(x, (0, 2, 3, 1))                          # (B, H, W, C)
    qkv = xc @ params["w_qkv"]                                   # to_qkv 1x1 conv, no bias
    q, k, v = jnp.split(qkv, 3, axis=-1)                         # each (B, H, W, hidden)

    def to_bhdn(t):   # '(b p) x y (h d)' -> 'b h d (x y p)'
        t = t.reshape(b, num_planes, H, W, heads, dim_head)
        t = jnp.transpose(t, (0, 4, 5, 2, 3, 1))                 # (b, h, d, x, y, p)
        return t.reshape(b, heads, dim_head, H * W * num_planes)

    q, k, v = to_bhdn(q), to_bhdn(k), to_bhdn(v)
    q = jax.nn.softmax(q, axis=-2) * scale
    k = jax.nn.softmax(k, axis=-1)
    v = v / (H * W)
    context = jnp.einsum("bhdn,bhen->bhde", k, v)
    out = jnp.einsum("bhde,bhdn->bhen", context, q)

    out = out.reshape(b, heads, dim_head, H, W, num_planes)
    out = jnp.transpose(out, (0, 5, 1, 2, 3, 4)).reshape(B, hidden, H, W)

    oc = jnp.transpose(out, (0, 2, 3, 1)) @ params["w_out"] + params["b_out"]   # (B, H, W, C)
    mean = jnp.mean(oc, axis=-1, keepdims=True)
    var = jnp.mean((oc - mean) ** 2, axis=-1, keepdims=True)
    y = (oc - mean) * lax.rsqrt(var + eps) * params["g"]
    return jnp.transpose(y, (0, 3, 1, 2))


if __name__ == "__main__":
    heads, dim_head, num_planes = 4, 32, 3
    dim = 64
    b_real, H, W = 2, 16, 8
    B = b_real * num_planes
    hidden = heads * dim_head

    key = jax.random.PRNGKey(0)
    ks = jax.random.split(key, 5)
    # deterministic synthetic parameters in matmul-ready (channel-last) layout
    params = {
        "w_qkv": 0.2 * jax.random.normal(ks[0], (dim, 3 * hidden), jnp.float32),  # Conv2d 1x1 W^T
        "w_out": 0.2 * jax.random.normal(ks[1], (hidden, dim), jnp.float32),      # out-proj W^T
        "b_out": 0.1 * jax.random.normal(ks[2], (1, dim), jnp.float32),
        "g": 1.0 + 0.1 * jax.random.normal(ks[3], (1, dim), jnp.float32),         # LayerNorm2D gain
    }
    # PyTorch-convention input: (b*num_planes, dim, H, W)
    x = jax.random.normal(ks[4], (B, dim, H, W), jnp.float32)

    # token_tile=128 -> 3 token tiles per batch element, exercising the online-softmax
    # context accumulation path as well as the parallel pass-2 grid.
    out = plane_aware_linear_attention_2d(x, params, heads, dim_head, num_planes,
                                          token_tile=128)
    out = jax.block_until_ready(out)

    ref = reference(x, params, heads, dim_head, num_planes)
    assert out.shape == (B, dim, H, W)
    out_np, ref_np = np.asarray(out), np.asarray(ref)
    if not np.allclose(out_np, ref_np, atol=2e-2, rtol=2e-2):
        max_err = float(np.max(np.abs(out_np - ref_np)))
        raise AssertionError(f"kernel mismatch vs reference, max abs err = {max_err}")

    print("KERNEL_OK")
</pallas_src>

<mosaic_0001>
module attributes {stable_mosaic.version = 11 : i64} {
  func.func @kernel(%arg0: i32, %arg1: i32, %arg2: memref<1x128x64xbf16, #tpu.memory_space<vmem>>, %arg3: memref<64x256xbf16, #tpu.memory_space<vmem>>, %arg4: memref<128x128xbf16, #tpu.memory_space<vmem>>, %arg5: memref<1x128x128xbf16, #tpu.memory_space<vmem>>, %arg6: memref<1x128xf32, #tpu.memory_space<vmem>>, %arg7: memref<1x128xf32, #tpu.memory_space<vmem>>, %arg8: memref<128x128xf32, #tpu.memory_space<vmem>>) attributes {dimension_semantics = [#tpu.dimension_semantics<parallel>, #tpu.dimension_semantics<arbitrary>], iteration_bounds = array<i64: 2, 3>, scalar_prefetch = 0 : i64, scratch_operands = 3 : i64, tpu.core_type = #tpu.core_type<tc>, window_params = [{transform_indices = @transform_0, window_bounds = array<i64: 1, 128, 64>}, {pipeline_mode = #tpu.pipeline_mode<synchronous>, transform_indices = @transform_1, window_bounds = array<i64: 64, 256>}, {pipeline_mode = #tpu.pipeline_mode<synchronous>, transform_indices = @transform_2, window_bounds = array<i64: 128, 128>}, {transform_indices = @transform_3, window_bounds = array<i64: 1, 128, 128>}]} {
    %c0_i32 = arith.constant 0 : i32
    %0 = arith.cmpi eq, %arg1, %c0_i32 : i32
    %1 = arith.extui %0 : i1 to i32
    %c0_i32_0 = arith.constant 0 : i32
    %2 = arith.cmpi ne, %1, %c0_i32_0 : i32
    scf.if %2 {
      %cst_21 = arith.constant 0xFF800000 : f32
      %37 = vector.broadcast %cst_21 : f32 to vector<1x128xf32>
      %c0_22 = arith.constant 0 : index
      %c0_23 = arith.constant 0 : index
      %38 = vector.load %arg6[%c0_22, %c0_23] : memref<1x128xf32, #tpu.memory_space<vmem>>, vector<1x128xf32>
      tpu.vector_store %arg6[%c0_22, %c0_23], %37 {strides = array<i32>} : memref<1x128xf32, #tpu.memory_space<vmem>>, vector<1x128xf32>,
      %cst_24 = arith.constant 0.000000e+00 : f32
      %39 = vector.broadcast %cst_24 : f32 to vector<1x128xf32>
      %c0_25 = arith.constant 0 : index
      %c0_26 = arith.constant 0 : index
      %40 = vector.load %arg7[%c0_25, %c0_26] : memref<1x128xf32, #tpu.memory_space<vmem>>, vector<1x128xf32>
      tpu.vector_store %arg7[%c0_25, %c0_26], %39 {strides = array<i32>} : memref<1x128xf32, #tpu.memory_space<vmem>>, vector<1x128xf32>,
      %cst_27 = arith.constant 0.000000e+00 : f32
      %41 = vector.broadcast %cst_27 : f32 to vector<128x128xf32>
      %c0_28 = arith.constant 0 : index
      %c0_29 = arith.constant 0 : index
      %42 = vector.load %arg8[%c0_28, %c0_29] : memref<128x128xf32, #tpu.memory_space<vmem>>, vector<128x128xf32>
      tpu.vector_store %arg8[%c0_28, %c0_29], %41 {strides = array<i32>} : memref<128x128xf32, #tpu.memory_space<vmem>>, vector<128x128xf32>,
    } else {
    }
    %c0 = arith.constant 0 : index
    %c0_1 = arith.constant 0 : index
    %c0_2 = arith.constant 0 : index
    %3 = vector.load %arg2[%c0, %c0_1, %c0_2] : memref<1x128x64xbf16, #tpu.memory_space<vmem>>, vector<1x128x64xbf16>
    %4 = vector.shape_cast %3 : vector<1x128x64xbf16> to vector<128x64xbf16>
    %c0_3 = arith.constant 0 : index
    %c0_4 = arith.constant 0 : index
    %5 = vector.load %arg3[%c0_3, %c0_4] : memref<64x256xbf16, #tpu.memory_space<vmem>>, vector<64x256xbf16>
    %cst = arith.constant dense<0.000000e+00> : vector<128x256xf32>
    %6 = tpu.matmul %4, %5, %cst {dimension_numbers = #tpu.dot_dimension_numbers<[1], [0], [0], [1], [0, 0, 1, 1], [], []>} : vector<128x64xbf16>, vector<64x256xbf16>, vector<128x256xf32> -> vector<128x256xf32>
    %7 = vector.extract_strided_slice %6 {offsets = [0, 0], sizes = [128, 128], strides = [1, 1]} : vector<128x256xf32> to vector<128x128xf32>
    %8 = vector.extract_strided_slice %6 {offsets = [0, 128], sizes = [128, 128], strides = [1, 1]} : vector<128x256xf32> to vector<128x128xf32>
    %9 = arith.truncf %8 : vector<128x128xf32> to vector<128x128xbf16>
    %c0_5 = arith.constant 0 : index
    %c0_6 = arith.constant 0 : index
    %10 = vector.load %arg6[%c0_5, %c0_6] : memref<1x128xf32, #tpu.memory_space<vmem>>, vector<1x128xf32>
    %cst_7 = arith.constant dense<0xFF800000> : vector<128xf32>
    %11 = vector.multi_reduction <maximumf>, %7, %cst_7 [0] : vector<128x128xf32> to vector<128xf32>
    %12 = vector.shape_cast %11 : vector<128xf32> to vector<1x128xf32>
    %13 = arith.maximumf %10, %12 : vector<1x128xf32>
    %14 = arith.subf %10, %13 : vector<1x128xf32>
    %15 = math.exp %14 : vector<1x128xf32>
    %16 = vector.broadcast %13 : vector<1x128xf32> to vector<128x128xf32>
    %17 = arith.subf %7, %16 : vector<128x128xf32>
    %18 = math.exp %17 : vector<128x128xf32>
    %c0_8 = arith.constant 0 : index
    %c0_9 = arith.constant 0 : index
    %19 = vector.load %arg7[%c0_8, %c0_9] : memref<1x128xf32, #tpu.memory_space<vmem>>, vector<1x128xf32>
    %20 = arith.mulf %15, %19 : vector<1x128xf32>
    %cst_10 = arith.constant dense<0.000000e+00> : vector<128xf32>
    %21 = vector.multi_reduction <add>, %18, %cst_10 [0] : vector<128x128xf32> to vector<128xf32>
    %22 = vector.shape_cast %21 : vector<128xf32> to vector<1x128xf32>
    %23 = arith.addf %20, %22 : vector<1x128xf32>
    %c0_11 = arith.constant 0 : index
    %c0_12 = arith.constant 0 : index
    %24 = vector.load %arg7[%c0_11, %c0_12] : memref<1x128xf32, #tpu.memory_space<vmem>>, vector<1x128xf32>
    tpu.vector_store %arg7[%c0_11, %c0_12], %23 {strides = array<i32>} : memref<1x128xf32, #tpu.memory_space<vmem>>, vector<1x128xf32>,
    %25 = arith.truncf %18 : vector<128x128xf32> to vector<128x128xbf16>
    %cst_13 = arith.constant dense<0.000000e+00> : vector<128x128xf32>
    %26 = tpu.matmul %25, %9, %cst_13 {dimension_numbers = #tpu.dot_dimension_numbers<[0], [0], [1], [1], [0, 1, 1, 1], [], []>} : vector<128x128xbf16>, vector<128x128xbf16>, vector<128x128xf32> -> vector<128x128xf32>
    %c0_14 = arith.constant 0 : index
    %c0_15 = arith.constant 0 : index
    %27 = vector.load %arg8[%c0_14, %c0_15] : memref<128x128xf32, #tpu.memory_space<vmem>>, vector<128x128xf32>
    %28 = tpu.transpose %15, [1, 0] : vector<1x128xf32> -> vector<128x1xf32>
    %29 = vector.broadcast %28 : vector<128x1xf32> to vector<128x128xf32>
    %30 = arith.mulf %27, %29 : vector<128x128xf32>
    %31 = arith.addf %30, %26 : vector<128x128xf32>
    %c0_16 = arith.constant 0 : index
    %c0_17 = arith.constant 0 : index
    %32 = vector.load %arg8[%c0_16, %c0_17] : memref<128x128xf32, #tpu.memory_space<vmem>>, vector<128x128xf32>
    tpu.vector_store %arg8[%c0_16, %c0_17], %31 {strides = array<i32>} : memref<128x128xf32, #tpu.memory_space<vmem>>, vector<128x128xf32>,
    %c0_18 = arith.constant 0 : index
    %c0_19 = arith.constant 0 : index
    %33 = vector.load %arg6[%c0_18, %c0_19] : memref<1x128xf32, #tpu.memory_space<vmem>>, vector<1x128xf32>
    tpu.vector_store %arg6[%c0_18, %c0_19], %13 {strides = array<i32>} : memref<1x128xf32, #tpu.memory_space<vmem>>, vector<1x128xf32>,
    %c2_i32 = arith.constant 2 : i32
    %34 = arith.cmpi eq, %arg1, %c2_i32 : i32
    %35 = arith.extui %34 : i1 to i32
    %c0_i32_20 = arith.constant 0 : i32
    %36 = arith.cmpi ne, %35, %c0_i32_20 : i32
    scf.if %36 {
      %c0_21 = arith.constant 0 : index
      %c0_22 = arith.constant 0 : index
      %37 = vector.load %arg7[%c0_21, %c0_22] : memref<1x128xf32, #tpu.memory_space<vmem>>, vector<1x128xf32>
      %38 = tpu.reciprocal %37 : vector<1x128xf32> -> vector<1x128xf32>
      %cst_23 = arith.constant 7.812500e-03 : f32
      %39 = vector.broadcast %cst_23 : f32 to vector<1x128xf32>
      %40 = arith.mulf %38, %39 : vector<1x128xf32>
      %41 = tpu.transpose %40, [1, 0] : vector<1x128xf32> -> vector<128x1xf32>
      %c0_24 = arith.constant 0 : index
      %c0_25 = arith.constant 0 : index
      %42 = vector.load %arg8[%c0_24, %c0_25] : memref<128x128xf32, #tpu.memory_space<vmem>>, vector<128x128xf32>
      %43 = vector.broadcast %41 : vector<128x1xf32> to vector<128x128xf32>
      %44 = arith.mulf %42, %43 : vector<128x128xf32>
      %c0_26 = arith.constant 0 : index
      %c0_27 = arith.constant 0 : index
      %45 = vector.load %arg4[%c0_26, %c0_27] : memref<128x128xbf16, #tpu.memory_space<vmem>>, vector<128x128xbf16>
      %46 = arith.extf %45 : vector<128x128xbf16> to vector<128x128xf32>
      %47 = arith.mulf %44, %46 : vector<128x128xf32>
      %48 = arith.truncf %47 : vector<128x128xf32> to vector<128x128xbf16>
      %c0_28 = arith.constant 0 : index
      %c0_29 = arith.constant 0 : index
      %c0_30 = arith.constant 0 : index
      %49 = vector.load %arg5[%c0_28, %c0_29, %c0_30] : memref<1x128x128xbf16, #tpu.memory_space<vmem>>, vector<1x128x128xbf16>
      %50 = vector.shape_cast %49 : vector<1x128x128xbf16> to vector<128x128xbf16>
      %51 = vector.shape_cast %48 : vector<128x128xbf16> to vector<1x128x128xbf16>
      tpu.vector_store %arg5[%c0_28, %c0_29, %c0_30], %51 {strides = array<i32>} : memref<1x128x128xbf16, #tpu.memory_space<vmem>>, vector<1x128x128xbf16>,
    } else {
    }
    return
  }
  func.func @transform_0(%arg0: i32, %arg1: i32) -> (i32, i32, i32) {
    %c0_i32 = arith.constant 0 : i32
    %c0_i32_0 = arith.constant 0 : i32
    return %arg0, %arg1, %c0_i32 : i32, i32, i32
  }
  func.func @transform_1(%arg0: i32, %arg1: i32) -> (i32, i32) {
    %c0_i32 = arith.constant 0 : i32
    %c0_i32_0 = arith.constant 0 : i32
    %c0_i32_1 = arith.constant 0 : i32
    return %c0_i32, %c0_i32_0 : i32, i32
  }
  func.func @transform_2(%arg0: i32, %arg1: i32) -> (i32, i32) {
    %c0_i32 = arith.constant 0 : i32
    %c0_i32_0 = arith.constant 0 : i32
    %c0_i32_1 = arith.constant 0 : i32
    return %c0_i32, %c0_i32_0 : i32, i32
  }
  func.func @transform_3(%arg0: i32, %arg1: i32) -> (i32, i32, i32) {
    %c0_i32 = arith.constant 0 : i32
    %c0_i32_0 = arith.constant 0 : i32
    %c0_i32_1 = arith.constant 0 : i32
    return %arg0, %c0_i32, %c0_i32_0 : i32, i32, i32
  }
}

</mosaic_0001>

<llo_original>
// kernel: tpu_custom_call.1
$region0: #{tpu_custom_call.1}
  #allocation0 [shape = 'u32[]', space=smem, size = 0x4, offset = 0x4, fixed_abs, tag = 'smem constant byte address 0x4 - core index']
  #allocation1 [shape = 'u32[144,128]{1,0:T(1,128)}', space=vmem, size = 0x12000, scoped, tag = 'internal scratch']
  #allocation2 [shape = 'f32[1,128]{1,0:T(1,128)}', space=vmem, size = 0x200, scoped, tag = 'scratch operand']
  #allocation3 [shape = 'f32[1,128]{1,0:T(1,128)}', space=vmem, size = 0x200, scoped, tag = 'scratch operand']
  #allocation4 [shape = 'f32[128,128]{1,0:T(8,128)}', space=vmem, size = 0x10000, scoped, tag = 'scratch operand']
  %s0 = inlined_call_operand.vmem [shape: bf16[2,384,64], index: 0, kind: input, shape index: {}]
  %s1 = inlined_call_operand.vmem [shape: bf16[64,256], index: 1, kind: input, shape index: {}]
  %s2 = inlined_call_operand.vmem [shape: bf16[128,128], index: 2, kind: input, shape index: {}]
  %s3 = inlined_call_operand.hbm [shape: bf16[2,128,128], index: 3, kind: output, shape index: {}]
  %s4 = sld [smem:[#allocation0]]
  $region53: #{tpu_custom_call.1} parent=0
    _
  %s6 = ssub.s32 1, %s4
  %s7 = scalar_select 0, %s6, %s4
  $region1: #{tpu_custom_call.1} parent=0
    #allocation5 [shape = 'u8[65536]{0}', space=vmem, size = 0x10000, scoped, tag = 'output window, operand 0']
    #allocation6 [shape = 's32[2]{0}', space=sflag, size = 0x8, scoped, tag = 'scoped memory for tpu_custom_call.1']
    %8 = vsyncpa [#allocation6], 0
    %s9 = scalar_lea.sflag [#allocation6], 1
    %10 = vsyncpa %s9, 0
    loop: start=0, step=1, limit=8
    $region2: #{tpu_custom_call.1} parent=1 // loop_pre_header
      _
    $region3: #{tpu_custom_call.1} parent=1 // loop_header
      %s12 = sphi 0, %s16
      %p13 = scmp.ge.s32.totalorder %s12, 8
      %s19 = sphi 0, %s31
      %s20 = sphi 0, %s27
      %s21 = sphi 0, %s19
      %s22 = sphi 0, %s20
      %s23 = sphi 0, %s21
      %s24 = sphi 0, %s22
      %s36 = sphi 0, %s38
      %s39 = sphi 0, %s36
      %s40 = sphi 0, %s39
      %s56 = sphi 0, %s40
      %s60 = sphi 0, %s60
      %s62 = sphi 0, %s60
      %s63 = sphi 0, %s62
      %s77 = sphi 0, %s63
      %s81 = sphi 0, %s81
      %s83 = sphi 0, %s81
      %s84 = sphi 0, %s83
      %s98 = sphi 0, %s84
      %s104 = sphi 0, %s106
      %s107 = sphi 0, %s104
      %s108 = sphi 0, %s107
      %s124 = sphi 0, %s108
    $region4: #{tpu_custom_call.1} parent=1 // loop_header_branch
      %15 = sbr.rel (%p13) target = $region8
    $region5: #{tpu_custom_call.1} parent=1 // loop_body
      %s17 = ssub.s32 %s12, 1
      %s18 = ssub.s32 %s12, 2
      %s25 = sadd.s32 1, %s20
      %p26 = scmp.ge.s32.totalorder %s25, 3
      %s27 = scalar_select %p26, 0, %s25
      %s28 = sadd.s32 1, %s19
      %s29 = scalar_select %p26, %s28, %s19
      %p30 = scmp.ge.s32.totalorder %s29, 2
      %s31 = scalar_select %p30, 0, %s29
      %s32 = ssub.s32 %s19, %s31
      %s33 = ssub.s32 %s20, %s27
      %s34 = sor.u32 %s32, %s33
      %p35 = scmp.eq.s32.totalorder %s34, 0
      %s37 = sadd.s32 %s36, 1
      %s38 = scalar_select %p35, %s36, %s37
      %p41 = pneg %p35
      %p42 = scmp.eq.s32.totalorder %s12, 5
      %p43 = por %p41, %p42
      %p44 = scmp.ne.s32.totalorder %s36, %s39
      %p45 = scmp.eq.s32.totalorder %s12, 0
      %p46 = por %p44, %p45
      %p47 = scmp.ne.s32.totalorder %s36, %s39
      %p48 = scmp.eq.s32.totalorder %s17, 5
      %p49 = por %p47, %p48
      %p50 = scmp.ne.s32.totalorder %s39, %s40
      %p51 = scmp.eq.s32.totalorder %s17, 0
      %p52 = por %p50, %p51
      %p53 = scmp.ne.s32.totalorder %s39, %s40
      %p54 = scmp.eq.s32.totalorder %s18, 5
      %p55 = por %p53, %p54
      %p57 = scmp.ne.s32.totalorder %s40, %s56
      %p58 = scmp.eq.s32.totalorder %s18, 0
      %p59 = por %p57, %p58
      %s61 = sadd.s32 %s60, 1
      %p64 = scmp.eq.s32.totalorder %s12, 5
      %p65 = scmp.ne.s32.totalorder %s60, %s62
      %p66 = scmp.eq.s32.totalorder %s12, 0
      %p67 = por %p65, %p66
      %p68 = scmp.ne.s32.totalorder %s60, %s62
      %p69 = scmp.eq.s32.totalorder %s17, 5
      %p70 = por %p68, %p69
      %p71 = scmp.ne.s32.totalorder %s62, %s63
      %p72 = scmp.eq.s32.totalorder %s17, 0
      %p73 = por %p71, %p72
      %p74 = scmp.ne.s32.totalorder %s62, %s63
      %p75 = scmp.eq.s32.totalorder %s18, 5
      %p76 = por %p74, %p75
      %p78 = scmp.ne.s32.totalorder %s63, %s77
      %p79 = scmp.eq.s32.totalorder %s18, 0
      %p80 = por %p78, %p79
      %s82 = sadd.s32 %s81, 1
      %p85 = scmp.eq.s32.totalorder %s12, 5
      %p86 = scmp.ne.s32.totalorder %s81, %s83
      %p87 = scmp.eq.s32.totalorder %s12, 0
      %p88 = por %p86, %p87
      %p89 = scmp.ne.s32.totalorder %s81, %s83
      %p90 = scmp.eq.s32.totalorder %s17, 5
      %p91 = por %p89, %p90
      %p92 = scmp.ne.s32.totalorder %s83, %s84
      %p93 = scmp.eq.s32.totalorder %s17, 0
      %p94 = por %p92, %p93
      %p95 = scmp.ne.s32.totalorder %s83, %s84
      %p96 = scmp.eq.s32.totalorder %s18, 5
      %p97 = por %p95, %p96
      %p99 = scmp.ne.s32.totalorder %s84, %s98
      %p100 = scmp.eq.s32.totalorder %s18, 0
      %p101 = por %p99, %p100
      %s102 = ssub.s32 %s19, %s31
      %p103 = scmp.eq.s32.totalorder %s102, 0
      %s105 = sadd.s32 %s104, 1
      %s106 = scalar_select %p103, %s104, %s105
      %p109 = pneg %p103
      %p110 = scmp.eq.s32.totalorder %s12, 5
      %p111 = por %p109, %p110
      %p112 = scmp.ne.s32.totalorder %s104, %s107
      %p113 = scmp.eq.s32.totalorder %s12, 0
      %p114 = por %p112, %p113
      %p115 = scmp.ne.s32.totalorder %s104, %s107
      %p116 = scmp.eq.s32.totalorder %s17, 5
      %p117 = por %p115, %p116
      %p118 = scmp.ne.s32.totalorder %s107, %s108
      %p119 = scmp.eq.s32.totalorder %s17, 0
      %p120 = por %p118, %p119
      %p121 = scmp.ne.s32.totalorder %s107, %s108
      %p122 = scmp.eq.s32.totalorder %s18, 5
      %p123 = por %p121, %p122
      %p125 = scmp.ne.s32.totalorder %s108, %s124
      %p126 = scmp.eq.s32.totalorder %s18, 0
      %p127 = por %p125, %p126
      %p128 = scmp.le.s32.totalorder 1, %s12
      %p129 = scmp.lt.s32.totalorder %s12, 7
      %p130 = pnand %p128, %p129
      %p131 = pneg %p130
      // Predicated region
      $region9: #{tpu_custom_call.1} parent=5 // pred_check
        _
      $region10: #{tpu_custom_call.1} parent=5 // pred_check_branch
        %133 = sbr.rel (%p130) target = $region12
      $region11: #{tpu_custom_call.1} parent=5 // pred_region
        %s134 = ssub.s32 %s12, 1
        // Predicated region
        $region13: #{tpu_custom_call.1} parent=11 // pred_check
          %p135 = pneg %p73
        $region14: #{tpu_custom_call.1} parent=11 // pred_check_branch
          %137 = sbr.rel (%p135) target = $region16
        $region15: #{tpu_custom_call.1} parent=11 // pred_region
          _
        $region16: #{tpu_custom_call.1} parent=11 // pred_fallthru
          _
        // Predicated region
        $region17: #{tpu_custom_call.1} parent=11 // pred_check
          %p138 = pneg %p94
        $region18: #{tpu_custom_call.1} parent=11 // pred_check_branch
          %140 = sbr.rel (%p138) target = $region20
        $region19: #{tpu_custom_call.1} parent=11 // pred_region
          _
        $region20: #{tpu_custom_call.1} parent=11 // pred_fallthru
          _
      $region12: #{tpu_custom_call.1} parent=5 // pred_fallthru
        _
      %p141 = scmp.lt.s32.totalorder %s12, 6
      // Predicated region
      $region21: #{tpu_custom_call.1} parent=5 // pred_check
        %p142 = pneg %p141
      $region22: #{tpu_custom_call.1} parent=5 // pred_check_branch
        %144 = sbr.rel (%p142) target = $region24
      $region23: #{tpu_custom_call.1} parent=5 // pred_region
        // Predicated region
        $region25: #{tpu_custom_call.1} parent=23 // pred_check
          %p145 = pneg %p46
        $region26: #{tpu_custom_call.1} parent=23 // pred_check_branch
          %147 = sbr.rel (%p145) target = $region28
        $region27: #{tpu_custom_call.1} parent=23 // pred_region
          %s148 = smul.u32 16, %s20
          %p149 = scmp.lt.s32.totalorder %s19, 1
          %s150 = scalar_select %p149, %s19, 1
          %p151 = scmp.lt.s32.totalorder %s148, 47
          %s152 = scalar_select %p151, %s148, 47
          %s153 = smul.addr %s150, 48
          %s154 = sadd.s32 %s152, %s153
          %s155 = smul.addr %s154, 4
          %s156 = scalar_lea.vmem %s0, %s155
          %s157 = smul.u32 16, %s20
        $region28: #{tpu_custom_call.1} parent=23 // pred_fallthru
          _
      $region24: #{tpu_custom_call.1} parent=5 // pred_fallthru
        _
      %p158 = scmp.le.s32.totalorder 1, %s12
      %p159 = scmp.lt.s32.totalorder %s12, 7
      %p160 = pnand %p158, %p159
      %p161 = pneg %p160
      // Predicated region
      $region29: #{tpu_custom_call.1} parent=5 // pred_check
        _
      $region30: #{tpu_custom_call.1} parent=5 // pred_check_branch
        %163 = sbr.rel (%p160) target = $region32
      $region31: #{tpu_custom_call.1} parent=5 // pred_region
        %s164 = ssub.s32 %s12, 1
        %s165 = smul.u32 16, %s22
        %p166 = scmp.lt.s32.totalorder %s21, 1
        %s167 = scalar_select %p166, %s21, 1
        %p168 = scmp.lt.s32.totalorder %s165, 47
        %s169 = scalar_select %p168, %s165, 47
        %s170 = smul.addr %s167, 48
        %s171 = sadd.s32 %s169, %s170
        %s172 = smul.addr %s171, 4
        %s173 = scalar_lea.vmem %s0, %s172
        %p174 = pneg %p52
        %p175 = pneg %p49
        %p176 = pneg %p73
        %p177 = pneg %p70
        %p178 = pneg %p94
        %p179 = pneg %p91
        %p180 = pneg %p120
        %p181 = pneg %p117
        %s182 = sand.u32 %s107, 1
        %s183 = scalar_lea.sflag [#allocation6], %s182
        %s184 = sand.u32 %s107, 1
        %s185 = smul.addr %s184, 64
        %s186 = scalar_lea.vmem [#allocation5], %s185
        %s187 = smul.u32 16, %s22
        %p188 = scmp.lt.s32.totalorder %s21, 1
        %s189 = scalar_select %p188, %s21, 1
        %p190 = scmp.lt.s32.totalorder %s187, 47
        %s191 = scalar_select %p190, %s187, 47
        %s192 = smul.addr %s189, 48
        %s193 = sadd.s32 %s191, %s192
        %s194 = smul.addr %s193, 4
        %s195 = scalar_lea.vmem %s0, %s194
        %s196 = smul.u32 16, %s22
        %p198 = scmp.eq.s32.totalorder %s22, 0
        // Predicated region
        $region33: #{tpu_custom_call.1} parent=31 // pred_check
          %p199 = pneg %p198
        $region34: #{tpu_custom_call.1} parent=31 // pred_check_branch
          %201 = sbr.rel (%p199) target = $region36
        $region35: #{tpu_custom_call.1} parent=31 // pred_region
          %202 = vst [vmem:[#allocation2] sm:$0x1] -inf
          %203 = vst [vmem:[#allocation3] sm:$0x1] 0.0
          %204 = vst [vmem:[#allocation4] sm:$0xff] 0.0
          %205 = vst [vmem:[#allocation4 + $0x8] sm:$0xff] 0.0
          %206 = vst [vmem:[#allocation4 + $0x10] sm:$0xff] 0.0
          %207 = vst [vmem:[#allocation4 + $0x18] sm:$0xff] 0.0
          %208 = vst [vmem:[#allocation4 + $0x20] sm:$0xff] 0.0
          %209 = vst [vmem:[#allocation4 + $0x28] sm:$0xff] 0.0
          %210 = vst [vmem:[#allocation4 + $0x30] sm:$0xff] 0.0
          %211 = vst [vmem:[#allocation4 + $0x38] sm:$0xff] 0.0
          %212 = vst [vmem:[#allocation4 + $0x40] sm:$0xff] 0.0
          %213 = vst [vmem:[#allocation4 + $0x48] sm:$0xff] 0.0
          %214 = vst [vmem:[#allocation4 + $0x50] sm:$0xff] 0.0
          %215 = vst [vmem:[#allocation4 + $0x58] sm:$0xff] 0.0
          %216 = vst [vmem:[#allocation4 + $0x60] sm:$0xff] 0.0
          %217 = vst [vmem:[#allocation4 + $0x68] sm:$0xff] 0.0
          %218 = vst [vmem:[#allocation4 + $0x70] sm:$0xff] 0.0
          %219 = vst [vmem:[#allocation4 + $0x78] sm:$0xff] 0.0
        $region36: #{tpu_custom_call.1} parent=31 // pred_fallthru
          _
        %v220 = vld [vmem:[%s195] sm:$0xf]
        %v221 = vld [vmem:[%s195 + $0x4] sm:$0xf]
        %v222 = vld [vmem:[%s195 + $0x8] sm:$0xf]
        %v223 = vld [vmem:[%s195 + $0xc] sm:$0xf]
        %v224 = vld [vmem:[%s195 + $0x10] sm:$0xf]
        %v225 = vld [vmem:[%s195 + $0x14] sm:$0xf]
        %v226 = vld [vmem:[%s195 + $0x18] sm:$0xf]
        %v227 = vld [vmem:[%s195 + $0x1c] sm:$0xf]
        %v228 = vld [vmem:[%s195 + $0x20] sm:$0xf]
        %v229 = vld [vmem:[%s195 + $0x24] sm:$0xf]
        %v230 = vld [vmem:[%s195 + $0x28] sm:$0xf]
        %v231 = vld [vmem:[%s195 + $0x2c] sm:$0xf]
        %v232 = vld [vmem:[%s195 + $0x30] sm:$0xf]
        %v233 = vld [vmem:[%s195 + $0x34] sm:$0xf]
        %v234 = vld [vmem:[%s195 + $0x38] sm:$0xf]
        %v235 = vld [vmem:[%s195 + $0x3c] sm:$0xf]
        %v236 = vld [vmem:[%s1] sm:$0xff]
        %v237 = vld [vmem:[%s1 + $0x8] sm:$0xff]
        %v238 = vld [vmem:[%s1 + $0x10] sm:$0xff]
        %v239 = vld [vmem:[%s1 + $0x18] sm:$0xff]
        %v240 = vld [vmem:[%s1 + $0x20] sm:$0xff]
        %v241 = vld [vmem:[%s1 + $0x28] sm:$0xff]
        %v242 = vld [vmem:[%s1 + $0x30] sm:$0xff]
        %v243 = vld [vmem:[%s1 + $0x38] sm:$0xff]
        %v260 = vunpack.c.l.b16 %v220
        %v261 = vunpack.c.l.b16 %v221
        %v262 = vunpack.c.l.b16 %v222
        %v263 = vunpack.c.l.b16 %v223
        %v264 = vunpack.c.l.b16 %v224
        %v265 = vunpack.c.l.b16 %v225
        %v266 = vunpack.c.l.b16 %v226
        %v267 = vunpack.c.l.b16 %v227
        %v268 = vunpack.c.l.b16 %v228
        %v269 = vunpack.c.l.b16 %v229
        %v270 = vunpack.c.l.b16 %v230
        %v271 = vunpack.c.l.b16 %v231
        %v272 = vunpack.c.l.b16 %v232
        %v273 = vunpack.c.l.b16 %v233
        %v274 = vunpack.c.l.b16 %v234
        %v275 = vunpack.c.l.b16 %v235
        %v276 = vpack.c.b16 %v261, %v260
        %v277 = vpack.c.b16 %v263, %v262
        %v278 = vpack.c.b16 %v265, %v264
        %v279 = vpack.c.b16 %v267, %v266
        %v280 = vpack.c.b16 %v269, %v268
        %v281 = vpack.c.b16 %v271, %v270
        %v282 = vpack.c.b16 %v273, %v272
        %v283 = vpack.c.b16 %v275, %v274
        %v292 = vunpack.c.l.b16 %v236
        %v293 = vunpack.c.h.b16 %v236
        %v294 = vunpack.c.l.b16 %v237
        %v295 = vunpack.c.h.b16 %v237
        %v296 = vunpack.c.l.b16 %v238
        %v297 = vunpack.c.h.b16 %v238
        %v298 = vunpack.c.l.b16 %v239
        %v299 = vunpack.c.h.b16 %v239
        %v300 = vunpack.c.l.b16 %v240
        %v301 = vunpack.c.h.b16 %v240
        %v302 = vunpack.c.l.b16 %v241
        %v303 = vunpack.c.h.b16 %v241
        %v304 = vunpack.c.l.b16 %v242
        %v305 = vunpack.c.h.b16 %v242
        %v306 = vunpack.c.l.b16 %v243
        %v307 = vunpack.c.h.b16 %v243
        %v308 = vpack.c.b16 %v294, %v292
        %v309 = vpack.c.b16 %v295, %v293
        %v310 = vpack.c.b16 %v298, %v296
        %v311 = vpack.c.b16 %v299, %v297
        %v312 = vpack.c.b16 %v302, %v300
        %v313 = vpack.c.b16 %v303, %v301
        %v314 = vpack.c.b16 %v306, %v304
        %v315 = vpack.c.b16 %v307, %v305
        %vm324 = vcmask 523264
        %v326 = vsel %vm324, %v276, 0
        %v329 = vsel %vm324, %v277, 0
        %v332 = vsel %vm324, %v278, 0
        %v335 = vsel %vm324, %v279, 0
        %v338 = vsel %vm324, %v280, 0
        %v341 = vsel %vm324, %v281, 0
        %v344 = vsel %vm324, %v282, 0
        %v347 = vsel %vm324, %v283, 0
        %349 = vmatprep.subr.bf16.mxu0 0
        %350 = vmatpush1.bf16.msra.mxu0 0
        %351 = vmatprep.subr.bf16.mxu0 0
        %352 = vmatpush1.bf16.msra.mxu0 0
        %353 = vmatprep.subr.bf16.mxu0 0
        %354 = vmatpush1.bf16.msra.mxu0 0
        %355 = vmatprep.subr.bf16.mxu0 0
        %356 = vmatpush1.bf16.msra.mxu0 0
        %357 = vmatprep.subr.bf16.mxu0 %v315
        %358 = vmatpush1.bf16.msra.mxu0 %v314
        %359 = vmatprep.subr.bf16.mxu0 %v313
        %360 = vmatpush1.bf16.msra.mxu0 %v312
        %361 = vmatprep.subr.bf16.mxu0 %v311
        %362 = vmatpush1.bf16.msra.mxu0 %v310
        %363 = vmatprep.subr.bf16.mxu0 %v309
        %364 = vmatpush1.bf16.msra.mxu0 %v308
        %365 = vmatprep.subr.bf16.mxu0 0
        %366 = vmatpush2.bf16.msra.mxu0 0
        %367 = vmatprep.subr.bf16.mxu0 0
        %368 = vmatpush2.bf16.msra.mxu0 0
        %369 = vmatprep.subr.bf16.mxu0 0
        %370 = vmatpush2.bf16.msra.mxu0 0
        %371 = vmatprep.subr.bf16.mxu0 0
        %372 = vmatpush2.bf16.msra.mxu0 0
        %373 = vmatprep.subr.bf16.mxu0 0
        %374 = vmatpush2.bf16.msra.mxu0 0
        %375 = vmatprep.subr.bf16.mxu0 0
        %376 = vmatpush2.bf16.msra.mxu0 0
        %377 = vmatprep.subr.bf16.mxu0 0
        %378 = vmatpush2.bf16.msra.mxu0 0
        %379 = vmatprep.subr.bf16.mxu0 0
        %380 = vmatpush2.bf16.msra.mxu0 0
        %381 = vmatprep.mubr.bf16.mxu0 0
        %382 = vmatmul.mubr.bf16.gmra.mxu0 %v326
        %v383 = vpop.f32.mrf.mxu0
        %v384 = vadd.f32 0.0, %v383
        %v385 = vpop.f32.mrf.mxu0
        %v386 = vadd.f32 0.0, %v385
        %v387 = vpop.f32.mrf.mxu0
        %v388 = vadd.f32 0.0, %v387
        %v389 = vpop.f32.mrf.mxu0
        %v390 = vadd.f32 0.0, %v389
        %391 = vmatprep.mubr.bf16.mxu0 0
        %392 = vmatmul.mubr.bf16.gmra.mxu0 %v329
        %v393 = vpop.f32.mrf.mxu0
        %v394 = vadd.f32 0.0, %v393
        %v395 = vpop.f32.mrf.mxu0
        %v396 = vadd.f32 0.0, %v395
        %v397 = vpop.f32.mrf.mxu0
        %v398 = vadd.f32 0.0, %v397
        %v399 = vpop.f32.mrf.mxu0
        %v400 = vadd.f32 0.0, %v399
        %401 = vmatprep.mubr.bf16.mxu0 0
        %402 = vmatmul.mubr.bf16.gmra.mxu0 %v332
        %v403 = vpop.f32.mrf.mxu0
        %v404 = vadd.f32 0.0, %v403
        %v405 = vpop.f32.mrf.mxu0
        %v406 = vadd.f32 0.0, %v405
        %v407 = vpop.f32.mrf.mxu0
        %v408 = vadd.f32 0.0, %v407
        %v409 = vpop.f32.mrf.mxu0
        %v410 = vadd.f32 0.0, %v409
        %411 = vmatprep.mubr.bf16.mxu0 0
        %412 = vmatmul.mubr.bf16.gmra.mxu0 %v335
        %v413 = vpop.f32.mrf.mxu0
        %v414 = vadd.f32 0.0, %v413
        %v415 = vpop.f32.mrf.mxu0
        %v416 = vadd.f32 0.0, %v415
        %v417 = vpop.f32.mrf.mxu0
        %v418 = vadd.f32 0.0, %v417
        %v419 = vpop.f32.mrf.mxu0
        %v420 = vadd.f32 0.0, %v419
        %421 = vmatprep.mubr.bf16.mxu0 0
        %422 = vmatmul.mubr.bf16.gmra.mxu0 %v338
        %v423 = vpop.f32.mrf.mxu0
        %v424 = vadd.f32 0.0, %v423
        %v425 = vpop.f32.mrf.mxu0
        %v426 = vadd.f32 0.0, %v425
        %v427 = vpop.f32.mrf.mxu0
        %v428 = vadd.f32 0.0, %v427
        %v429 = vpop.f32.mrf.mxu0
        %v430 = vadd.f32 0.0, %v429
        %431 = vmatprep.mubr.bf16.mxu0 0
        %432 = vmatmul.mubr.bf16.gmra.mxu0 %v341
        %v433 = vpop.f32.mrf.mxu0
        %v434 = vadd.f32 0.0, %v433
        %v435 = vpop.f32.mrf.mxu0
        %v436 = vadd.f32 0.0, %v435
        %v437 = vpop.f32.mrf.mxu0
        %v438 = vadd.f32 0.0, %v437
        %v439 = vpop.f32.mrf.mxu0
        %v440 = vadd.f32 0.0, %v439
        %441 = vmatprep.mubr.bf16.mxu0 0
        %442 = vmatmul.mubr.bf16.gmra.mxu0 %v344
        %v443 = vpop.f32.mrf.mxu0
        %v444 = vadd.f32 0.0, %v443
        %v445 = vpop.f32.mrf.mxu0
        %v446 = vadd.f32 0.0, %v445
        %v447 = vpop.f32.mrf.mxu0
        %v448 = vadd.f32 0.0, %v447
        %v449 = vpop.f32.mrf.mxu0
        %v450 = vadd.f32 0.0, %v449
        %451 = vmatprep.mubr.bf16.mxu0 0
        %452 = vmatmul.mubr.bf16.gmra.mxu0 %v347
        %v453 = vpop.f32.mrf.mxu0
        %v454 = vadd.f32 0.0, %v453
        %v455 = vpop.f32.mrf.mxu0
        %v456 = vadd.f32 0.0, %v455
        %v457 = vpop.f32.mrf.mxu0
        %v458 = vadd.f32 0.0, %v457
        %v459 = vpop.f32.mrf.mxu0
        %v460 = vadd.f32 0.0, %v459
        %461 = vdwg.mxu0
        %v462 = vpack.c.bf16 %v390, %v386
        %v463 = vpack.c.bf16 %v400, %v396
        %v464 = vpack.c.bf16 %v410, %v406
        %v465 = vpack.c.bf16 %v420, %v416
        %v466 = vpack.c.bf16 %v430, %v426
        %v467 = vpack.c.bf16 %v440, %v436
        %v468 = vpack.c.bf16 %v450, %v446
        %v469 = vpack.c.bf16 %v460, %v456
        %v470 = vld [vmem:[#allocation2] sm:$0x1]
        %v471 = vmax.f32 %v384, %v404
        %v472 = vmax.f32 %v388, %v408
        %v473 = vmax.f32 %v394, %v414
        %v474 = vmax.f32 %v398, %v418
        %v475 = vmax.f32 %v471, %v424
        %v476 = vmax.f32 %v472, %v428
        %v477 = vmax.f32 %v473, %v434
        %v478 = vmax.f32 %v474, %v438
        %v479 = vmax.f32 %v475, %v444
        %v480 = vmax.f32 %v476, %v448
        %v481 = vmax.f32 %v477, %v454
        %v482 = vmax.f32 %v478, %v458
        %v483 = vmax.f32 %v479, %v480
        %v484 = vmax.f32 %v481, %v482
        %v485 = vmax.f32 %v483, %v484
        %v486 = vrot.slane %v485, 4
        %v487 = vmax.f32 %v485, %v486
        %v488 = vrot.slane %v487, 2
        %v489 = vmax.f32 %v487, %v488
        %v490 = vrot.slane %v489, 1
        %v491 = vmax.f32 %v489, %v490
        %v492 = vmax.f32 %v470, %v491
        %v493 = vsub.f32 %v470, %v492
        %v494 = vmul.f32 %v493, 1.442695
        %v495 = vpow.pop %v494
        %v497 = vlaneseq
        %v498 = vshrl.u32 %v497, 7
        %v499 = vsub.s32 0, %v498
        %v500 = vrot.slane %v492, %v499
        %v502 = vsub.f32 %v384, %v500
        %v503 = vsub.f32 %v388, %v500
        %v504 = vsub.f32 %v394, %v500
        %v505 = vsub.f32 %v398, %v500
        %v506 = vsub.f32 %v404, %v500
        %v507 = vsub.f32 %v408, %v500
        %v508 = vsub.f32 %v414, %v500
        %v509 = vsub.f32 %v418, %v500
        %v510 = vsub.f32 %v424, %v500
        %v511 = vsub.f32 %v428, %v500
        %v512 = vsub.f32 %v434, %v500
        %v513 = vsub.f32 %v438, %v500
        %v514 = vsub.f32 %v444, %v500
        %v515 = vsub.f32 %v448, %v500
        %v516 = vsub.f32 %v454, %v500
        %v517 = vsub.f32 %v458, %v500
        %v518 = vmul.f32 %v502, 1.442695
        %v519 = vpow.pop %v518
        %v520 = vmul.f32 %v503, 1.442695
        %v521 = vpow.pop %v520
        %v522 = vmul.f32 %v504, 1.442695
        %v523 = vpow.pop %v522
        %v524 = vmul.f32 %v505, 1.442695
        %v525 = vpow.pop %v524
        %v526 = vmul.f32 %v506, 1.442695
        %v527 = vpow.pop %v526
        %v528 = vmul.f32 %v507, 1.442695
        %v529 = vpow.pop %v528
        %v530 = vmul.f32 %v508, 1.442695
        %v531 = vpow.pop %v530
        %v532 = vmul.f32 %v509, 1.442695
        %v533 = vpow.pop %v532
        %v534 = vmul.f32 %v510, 1.442695
        %v535 = vpow.pop %v534
        %v536 = vmul.f32 %v511, 1.442695
        %v537 = vpow.pop %v536
        %v538 = vmul.f32 %v512, 1.442695
        %v539 = vpow.pop %v538
        %v540 = vmul.f32 %v513, 1.442695
        %v541 = vpow.pop %v540
        %v542 = vmul.f32 %v514, 1.442695
        %v543 = vpow.pop %v542
        %v544 = vmul.f32 %v515, 1.442695
        %v545 = vpow.pop %v544
        %v546 = vmul.f32 %v516, 1.442695
        %v547 = vpow.pop %v546
        %v548 = vmul.f32 %v517, 1.442695
        %v549 = vpow.pop %v548
        %v550 = vld [vmem:[#allocation3] sm:$0x1]
        %v551 = vmul.f32 %v495, %v550
        %v552 = vadd.f32 %v519, %v521
        %v553 = vadd.f32 %v552, %v523
        %v554 = vadd.f32 %v553, %v525
        %v555 = vadd.f32 %v554, %v527
        %v556 = vadd.f32 %v555, %v529
        %v557 = vadd.f32 %v556, %v531
        %v558 = vadd.f32 %v557, %v533
        %v559 = vadd.f32 %v558, %v535
        %v560 = vadd.f32 %v559, %v537
        %v561 = vadd.f32 %v560, %v539
        %v562 = vadd.f32 %v561, %v541
        %v563 = vadd.f32 %v562, %v543
        %v564 = vadd.f32 %v563, %v545
        %v565 = vadd.f32 %v564, %v547
        %v566 = vadd.f32 %v565, %v549
        %v567 = vrot.slane %v566, 4
        %v568 = vadd.f32 %v566, %v567
        %v569 = vrot.slane %v568, 2
        %v570 = vadd.f32 %v568, %v569
        %v571 = vrot.slane %v570, 1
        %v572 = vadd.f32 %v570, %v571
        %v573 = vadd.f32 %v551, %v572
        %574 = vst [vmem:[#allocation3] sm:$0x1] %v573
        %v575 = vpack.c.bf16 %v521, %v519
        %v576 = vpack.c.bf16 %v525, %v523
        %v577 = vpack.c.bf16 %v529, %v527
        %v578 = vpack.c.bf16 %v533, %v531
        %v579 = vpack.c.bf16 %v537, %v535
        %v580 = vpack.c.bf16 %v541, %v539
        %v581 = vpack.c.bf16 %v545, %v543
        %v582 = vpack.c.bf16 %v549, %v547
        %583 = vxpose.xlu0.c.b16.start [1/8] %v575, 128
        %584 = vxpose.xlu0.c.b16.cont [2/8] %v576, 128
        %585 = vxpose.xlu0.c.b16.cont [3/8] %v577, 128
        %586 = vxpose.xlu0.c.b16.cont [4/8] %v578, 128
        %587 = vxpose.xlu0.c.b16.cont [5/8] %v579, 128
        %588 = vxpose.xlu0.c.b16.cont [6/8] %v580, 128
        %589 = vxpose.xlu0.c.b16.cont [7/8] %v581, 128
        %590 = vxpose.xlu0.c.b16.end [8/8] %v582, 128
        %v591 = vpop.trf.xlu0
        %v592 = vpop.trf.xlu0
        %v593 = vpop.trf.xlu0
        %v594 = vpop.trf.xlu0
        %v595 = vpop.trf.xlu0
        %v596 = vpop.trf.xlu0
        %v597 = vpop.trf.xlu0
        %v598 = vpop.trf.xlu0
        %599 = vmatprep.subr.bf16.mxu0 0
        %600 = vmatpush1.bf16.msra.mxu0 %v469
        %601 = vmatprep.subr.bf16.mxu0 0
        %602 = vmatpush1.bf16.msra.mxu0 %v468
        %603 = vmatprep.subr.bf16.mxu0 0
        %604 = vmatpush1.bf16.msra.mxu0 %v467
        %605 = vmatprep.subr.bf16.mxu0 0
        %606 = vmatpush1.bf16.msra.mxu0 %v466
        %607 = vmatprep.subr.bf16.mxu0 0
        %608 = vmatpush1.bf16.msra.mxu0 %v465
        %609 = vmatprep.subr.bf16.mxu0 0
        %610 = vmatpush1.bf16.msra.mxu0 %v464
        %611 = vmatprep.subr.bf16.mxu0 0
        %612 = vmatpush1.bf16.msra.mxu0 %v463
        %613 = vmatprep.subr.bf16.mxu0 0
        %614 = vmatpush1.bf16.msra.mxu0 %v462
        %615 = vmatprep.subr.bf16.mxu0 0
        %616 = vmatpush2.bf16.msra.mxu0 0
        %617 = vmatprep.subr.bf16.mxu0 0
        %618 = vmatpush2.bf16.msra.mxu0 0
        %619 = vmatprep.subr.bf16.mxu0 0
        %620 = vmatpush2.bf16.msra.mxu0 0
        %621 = vmatprep.subr.bf16.mxu0 0
        %622 = vmatpush2.bf16.msra.mxu0 0
        %623 = vmatprep.subr.bf16.mxu0 0
        %624 = vmatpush2.bf16.msra.mxu0 0
        %625 = vmatprep.subr.bf16.mxu0 0
        %626 = vmatpush2.bf16.msra.mxu0 0
        %627 = vmatprep.subr.bf16.mxu0 0
        %628 = vmatpush2.bf16.msra.mxu0 0
        %629 = vmatprep.subr.bf16.mxu0 0
        %630 = vmatpush2.bf16.msra.mxu0 0
        %631 = vmatprep.mubr.bf16.mxu0 0
        %632 = vmatmul.mubr.bf16.gmra.mxu0 %v591
        %v633 = vpop.f32.mrf.mxu0
        %v634 = vadd.f32 0.0, %v633
        %v635 = vpop.f32.mrf.mxu0
        %v636 = vpop.f32.mrf.mxu0
        %v637 = vadd.f32 0.0, %v636
        %v638 = vpop.f32.mrf.mxu0
        %639 = vmatprep.mubr.bf16.mxu0 0
        %640 = vmatmul.mubr.bf16.gmra.mxu0 %v592
        %v641 = vpop.f32.mrf.mxu0
        %v642 = vadd.f32 0.0, %v641
        %v643 = vpop.f32.mrf.mxu0
        %v644 = vpop.f32.mrf.mxu0
        %v645 = vadd.f32 0.0, %v644
        %v646 = vpop.f32.mrf.mxu0
        %647 = vmatprep.mubr.bf16.mxu0 0
        %648 = vmatmul.mubr.bf16.gmra.mxu0 %v593
        %v649 = vpop.f32.mrf.mxu0
        %v650 = vadd.f32 0.0, %v649
        %v651 = vpop.f32.mrf.mxu0
        %v652 = vpop.f32.mrf.mxu0
        %v653 = vadd.f32 0.0, %v652
        %v654 = vpop.f32.mrf.mxu0
        %655 = vmatprep.mubr.bf16.mxu0 0
        %656 = vmatmul.mubr.bf16.gmra.mxu0 %v594
        %v657 = vpop.f32.mrf.mxu0
        %v658 = vadd.f32 0.0, %v657
        %v659 = vpop.f32.mrf.mxu0
        %v660 = vpop.f32.mrf.mxu0
        %v661 = vadd.f32 0.0, %v660
        %v662 = vpop.f32.mrf.mxu0
        %663 = vmatprep.mubr.bf16.mxu0 0
        %664 = vmatmul.mubr.bf16.gmra.mxu0 %v595
        %v665 = vpop.f32.mrf.mxu0
        %v666 = vadd.f32 0.0, %v665
        %v667 = vpop.f32.mrf.mxu0
        %v668 = vpop.f32.mrf.mxu0
        %v669 = vadd.f32 0.0, %v668
        %v670 = vpop.f32.mrf.mxu0
        %671 = vmatprep.mubr.bf16.mxu0 0
        %672 = vmatmul.mubr.bf16.gmra.mxu0 %v596
        %v673 = vpop.f32.mrf.mxu0
        %v674 = vadd.f32 0.0, %v673
        %v675 = vpop.f32.mrf.mxu0
        %v676 = vpop.f32.mrf.mxu0
        %v677 = vadd.f32 0.0, %v676
        %v678 = vpop.f32.mrf.mxu0
        %679 = vmatprep.mubr.bf16.mxu0 0
        %680 = vmatmul.mubr.bf16.gmra.mxu0 %v597
        %v681 = vpop.f32.mrf.mxu0
        %v682 = vadd.f32 0.0, %v681
        %v683 = vpop.f32.mrf.mxu0
        %v684 = vpop.f32.mrf.mxu0
        %v685 = vadd.f32 0.0, %v684
        %v686 = vpop.f32.mrf.mxu0
        %687 = vmatprep.mubr.bf16.mxu0 0
        %688 = vmatmul.mubr.bf16.gmra.mxu0 %v598
        %v689 = vpop.f32.mrf.mxu0
        %v690 = vadd.f32 0.0, %v689
        %v691 = vpop.f32.mrf.mxu0
        %v692 = vpop.f32.mrf.mxu0
        %v693 = vadd.f32 0.0, %v692
        %v694 = vpop.f32.mrf.mxu0
        %695 = vdwg.mxu0
        %v696 = vld [vmem:[#allocation4] sm:$0xff]
        %v697 = vld [vmem:[#allocation4 + $0x8] sm:$0xff]
        %v698 = vld [vmem:[#allocation4 + $0x10] sm:$0xff]
        %v699 = vld [vmem:[#allocation4 + $0x18] sm:$0xff]
        %v700 = vld [vmem:[#allocation4 + $0x20] sm:$0xff]
        %v701 = vld [vmem:[#allocation4 + $0x28] sm:$0xff]
        %v702 = vld [vmem:[#allocation4 + $0x30] sm:$0xff]
        %v703 = vld [vmem:[#allocation4 + $0x38] sm:$0xff]
        %v704 = vld [vmem:[#allocation4 + $0x40] sm:$0xff]
        %v705 = vld [vmem:[#allocation4 + $0x48] sm:$0xff]
        %v706 = vld [vmem:[#allocation4 + $0x50] sm:$0xff]
        %v707 = vld [vmem:[#allocation4 + $0x58] sm:$0xff]
        %v708 = vld [vmem:[#allocation4 + $0x60] sm:$0xff]
        %v709 = vld [vmem:[#allocation4 + $0x68] sm:$0xff]
        %v710 = vld [vmem:[#allocation4 + $0x70] sm:$0xff]
        %v711 = vld [vmem:[#allocation4 + $0x78] sm:$0xff]
        %712 = vxpose.xlu0.b32.start [1/16] %v495, 128
        %713 = vxpose.xlu0.b32.cont [2/16] 0.0, 128
        %714 = vxpose.xlu0.b32.cont [3/16] 0.0, 128
        %715 = vxpose.xlu0.b32.cont [4/16] 0.0, 128
        %716 = vxpose.xlu0.b32.cont [5/16] 0.0, 128
        %717 = vxpose.xlu0.b32.cont [6/16] 0.0, 128
        %718 = vxpose.xlu0.b32.cont [7/16] 0.0, 128
        %719 = vxpose.xlu0.b32.cont [8/16] 0.0, 128
        %720 = vxpose.xlu0.b32.cont [9/16] 0.0, 128
        %721 = vxpose.xlu0.b32.cont [10/16] 0.0, 128
        %722 = vxpose.xlu0.b32.cont [11/16] 0.0, 128
        %723 = vxpose.xlu0.b32.cont [12/16] 0.0, 128
        %724 = vxpose.xlu0.b32.cont [13/16] 0.0, 128
        %725 = vxpose.xlu0.b32.cont [14/16] 0.0, 128
        %726 = vxpose.xlu0.b32.cont [15/16] 0.0, 128
        %727 = vxpose.xlu0.b32.end [16/16] 0.0, 128
        %v728 = vpop.trf.xlu0
        %v729 = vpop.trf.xlu0
        %v730 = vpop.trf.xlu0
        %v731 = vpop.trf.xlu0
        %v732 = vpop.trf.xlu0
        %v733 = vpop.trf.xlu0
        %v734 = vpop.trf.xlu0
        %v735 = vpop.trf.xlu0
        %v736 = vpop.trf.xlu0
        %v737 = vpop.trf.xlu0
        %v738 = vpop.trf.xlu0
        %v739 = vpop.trf.xlu0
        %v740 = vpop.trf.xlu0
        %v741 = vpop.trf.xlu0
        %v742 = vpop.trf.xlu0
        %v743 = vpop.trf.xlu0
        %745 = vset.pattern.permute.xlu0 0
        %746 = vperm.xlu0 %745, %v728
        %v747 = vpop.permute.xlu0 %746
        %750 = vset.pattern.permute.xlu0 0
        %751 = vperm.xlu0 %750, %v729
        %v752 = vpop.permute.xlu0 %751
        %755 = vset.pattern.permute.xlu0 0
        %756 = vperm.xlu0 %755, %v730
        %v757 = vpop.permute.xlu0 %756
        %760 = vset.pattern.permute.xlu0 0
        %761 = vperm.xlu0 %760, %v731
        %v762 = vpop.permute.xlu0 %761
        %765 = vset.pattern.permute.xlu0 0
        %766 = vperm.xlu0 %765, %v732
        %v767 = vpop.permute.xlu0 %766
        %770 = vset.pattern.permute.xlu0 0
        %771 = vperm.xlu0 %770, %v733
        %v772 = vpop.permute.xlu0 %771
        %775 = vset.pattern.permute.xlu0 0
        %776 = vperm.xlu0 %775, %v734
        %v777 = vpop.permute.xlu0 %776
        %780 = vset.pattern.permute.xlu0 0
        %781 = vperm.xlu0 %780, %v735
        %v782 = vpop.permute.xlu0 %781
        %785 = vset.pattern.permute.xlu0 0
        %786 = vperm.xlu0 %785, %v736
        %v787 = vpop.permute.xlu0 %786
        %790 = vset.pattern.permute.xlu0 0
        %791 = vperm.xlu0 %790, %v737
        %v792 = vpop.permute.xlu0 %791
        %795 = vset.pattern.permute.xlu0 0
        %796 = vperm.xlu0 %795, %v738
        %v797 = vpop.permute.xlu0 %796
        %800 = vset.pattern.permute.xlu0 0
        %801 = vperm.xlu0 %800, %v739
        %v802 = vpop.permute.xlu0 %801
        %805 = vset.pattern.permute.xlu0 0
        %806 = vperm.xlu0 %805, %v740
        %v807 = vpop.permute.xlu0 %806
        %810 = vset.pattern.permute.xlu0 0
        %811 = vperm.xlu0 %810, %v741
        %v812 = vpop.permute.xlu0 %811
        %815 = vset.pattern.permute.xlu0 0
        %816 = vperm.xlu0 %815, %v742
        %v817 = vpop.permute.xlu0 %816
        %820 = vset.pattern.permute.xlu0 0
        %821 = vperm.xlu0 %820, %v743
        %v822 = vpop.permute.xlu0 %821
        %v824 = vmul.f32 %v696, %v747
        %v825 = vmul.f32 %v697, %v752
        %v826 = vmul.f32 %v698, %v757
        %v827 = vmul.f32 %v699, %v762
        %v828 = vmul.f32 %v700, %v767
        %v829 = vmul.f32 %v701, %v772
        %v830 = vmul.f32 %v702, %v777
        %v831 = vmul.f32 %v703, %v782
        %v832 = vmul.f32 %v704, %v787
        %v833 = vmul.f32 %v705, %v792
        %v834 = vmul.f32 %v706, %v797
        %v835 = vmul.f32 %v707, %v802
        %v836 = vmul.f32 %v708, %v807
        %v837 = vmul.f32 %v709, %v812
        %v838 = vmul.f32 %v710, %v817
        %v839 = vmul.f32 %v711, %v822
        %v840 = vadd.f32 %v824, %v634
        %v841 = vadd.f32 %v825, %v637
        %v842 = vadd.f32 %v826, %v642
        %v843 = vadd.f32 %v827, %v645
        %v844 = vadd.f32 %v828, %v650
        %v845 = vadd.f32 %v829, %v653
        %v846 = vadd.f32 %v830, %v658
        %v847 = vadd.f32 %v831, %v661
        %v848 = vadd.f32 %v832, %v666
        %v849 = vadd.f32 %v833, %v669
        %v850 = vadd.f32 %v834, %v674
        %v851 = vadd.f32 %v835, %v677
        %v852 = vadd.f32 %v836, %v682
        %v853 = vadd.f32 %v837, %v685
        %v854 = vadd.f32 %v838, %v690
        %v855 = vadd.f32 %v839, %v693
        %856 = vst [vmem:[#allocation4] sm:$0xff] %v840
        %857 = vst [vmem:[#allocation4 + $0x8] sm:$0xff] %v841
        %858 = vst [vmem:[#allocation4 + $0x10] sm:$0xff] %v842
        %859 = vst [vmem:[#allocation4 + $0x18] sm:$0xff] %v843
        %860 = vst [vmem:[#allocation4 + $0x20] sm:$0xff] %v844
        %861 = vst [vmem:[#allocation4 + $0x28] sm:$0xff] %v845
        %862 = vst [vmem:[#allocation4 + $0x30] sm:$0xff] %v846
        %863 = vst [vmem:[#allocation4 + $0x38] sm:$0xff] %v847
        %864 = vst [vmem:[#allocation4 + $0x40] sm:$0xff] %v848
        %865 = vst [vmem:[#allocation4 + $0x48] sm:$0xff] %v849
        %866 = vst [vmem:[#allocation4 + $0x50] sm:$0xff] %v850
        %867 = vst [vmem:[#allocation4 + $0x58] sm:$0xff] %v851
        %868 = vst [vmem:[#allocation4 + $0x60] sm:$0xff] %v852
        %869 = vst [vmem:[#allocation4 + $0x68] sm:$0xff] %v853
        %870 = vst [vmem:[#allocation4 + $0x70] sm:$0xff] %v854
        %871 = vst [vmem:[#allocation4 + $0x78] sm:$0xff] %v855
        %872 = vst [vmem:[#allocation2] sm:$0x1] %v492
        %p873 = scmp.eq.s32.totalorder %s22, 2
        // Predicated region
        $region37: #{tpu_custom_call.1} parent=31 // pred_check
          %p874 = pneg %p873
        $region38: #{tpu_custom_call.1} parent=31 // pred_check_branch
          %876 = sbr.rel (%p874) target = $region40
        $region39: #{tpu_custom_call.1} parent=31 // pred_region
          %v877 = vld [vmem:[#allocation3] sm:$0x1]
          %v878 = vrcp.pop %v877
          %v879 = vmul.f32 %v878, 0.0078125
          %880 = vxpose.xlu0.b32.start [1/16] %v879, 128
          %881 = vxpose.xlu0.b32.cont [2/16] 0.0, 128
          %882 = vxpose.xlu0.b32.cont [3/16] 0.0, 128
          %883 = vxpose.xlu0.b32.cont [4/16] 0.0, 128
          %884 = vxpose.xlu0.b32.cont [5/16] 0.0, 128
          %885 = vxpose.xlu0.b32.cont [6/16] 0.0, 128
          %886 = vxpose.xlu0.b32.cont [7/16] 0.0, 128
          %887 = vxpose.xlu0.b32.cont [8/16] 0.0, 128
          %888 = vxpose.xlu0.b32.cont [9/16] 0.0, 128
          %889 = vxpose.xlu0.b32.cont [10/16] 0.0, 128
          %890 = vxpose.xlu0.b32.cont [11/16] 0.0, 128
          %891 = vxpose.xlu0.b32.cont [12/16] 0.0, 128
          %892 = vxpose.xlu0.b32.cont [13/16] 0.0, 128
          %893 = vxpose.xlu0.b32.cont [14/16] 0.0, 128
          %894 = vxpose.xlu0.b32.cont [15/16] 0.0, 128
          %895 = vxpose.xlu0.b32.end [16/16] 0.0, 128
          %v896 = vpop.trf.xlu0
          %v897 = vpop.trf.xlu0
          %v898 = vpop.trf.xlu0
          %v899 = vpop.trf.xlu0
          %v900 = vpop.trf.xlu0
          %v901 = vpop.trf.xlu0
          %v902 = vpop.trf.xlu0
          %v903 = vpop.trf.xlu0
          %v904 = vpop.trf.xlu0
          %v905 = vpop.trf.xlu0
          %v906 = vpop.trf.xlu0
          %v907 = vpop.trf.xlu0
          %v908 = vpop.trf.xlu0
          %v909 = vpop.trf.xlu0
          %v910 = vpop.trf.xlu0
          %v911 = vpop.trf.xlu0
          %v912 = vld [vmem:[#allocation4] sm:$0xff]
          %v913 = vld [vmem:[#allocation4 + $0x8] sm:$0xff]
          %v914 = vld [vmem:[#allocation4 + $0x10] sm:$0xff]
          %v915 = vld [vmem:[#allocation4 + $0x18] sm:$0xff]
          %v916 = vld [vmem:[#allocation4 + $0x20] sm:$0xff]
          %v917 = vld [vmem:[#allocation4 + $0x28] sm:$0xff]
          %v918 = vld [vmem:[#allocation4 + $0x30] sm:$0xff]
          %v919 = vld [vmem:[#allocation4 + $0x38] sm:$0xff]
          %v920 = vld [vmem:[#allocation4 + $0x40] sm:$0xff]
          %v921 = vld [vmem:[#allocation4 + $0x48] sm:$0xff]
          %v922 = vld [vmem:[#allocation4 + $0x50] sm:$0xff]
          %v923 = vld [vmem:[#allocation4 + $0x58] sm:$0xff]
          %v924 = vld [vmem:[#allocation4 + $0x60] sm:$0xff]
          %v925 = vld [vmem:[#allocation4 + $0x68] sm:$0xff]
          %v926 = vld [vmem:[#allocation4 + $0x70] sm:$0xff]
          %v927 = vld [vmem:[#allocation4 + $0x78] sm:$0xff]
          %929 = vset.pattern.permute.xlu0 0
          %930 = vperm.xlu0 %929, %v896
          %v931 = vpop.permute.xlu0 %930
          %934 = vset.pattern.permute.xlu0 0
          %935 = vperm.xlu0 %934, %v897
          %v936 = vpop.permute.xlu0 %935
          %939 = vset.pattern.permute.xlu0 0
          %940 = vperm.xlu0 %939, %v898
          %v941 = vpop.permute.xlu0 %940
          %944 = vset.pattern.permute.xlu0 0
          %945 = vperm.xlu0 %944, %v899
          %v946 = vpop.permute.xlu0 %945
          %949 = vset.pattern.permute.xlu0 0
          %950 = vperm.xlu0 %949, %v900
          %v951 = vpop.permute.xlu0 %950
          %954 = vset.pattern.permute.xlu0 0
          %955 = vperm.xlu0 %954, %v901
          %v956 = vpop.permute.xlu0 %955
          %959 = vset.pattern.permute.xlu0 0
          %960 = vperm.xlu0 %959, %v902
          %v961 = vpop.permute.xlu0 %960
          %964 = vset.pattern.permute.xlu0 0
          %965 = vperm.xlu0 %964, %v903
          %v966 = vpop.permute.xlu0 %965
          %969 = vset.pattern.permute.xlu0 0
          %970 = vperm.xlu0 %969, %v904
          %v971 = vpop.permute.xlu0 %970
          %974 = vset.pattern.permute.xlu0 0
          %975 = vperm.xlu0 %974, %v905
          %v976 = vpop.permute.xlu0 %975
          %979 = vset.pattern.permute.xlu0 0
          %980 = vperm.xlu0 %979, %v906
          %v981 = vpop.permute.xlu0 %980
          %984 = vset.pattern.permute.xlu0 0
          %985 = vperm.xlu0 %984, %v907
          %v986 = vpop.permute.xlu0 %985
          %989 = vset.pattern.permute.xlu0 0
          %990 = vperm.xlu0 %989, %v908
          %v991 = vpop.permute.xlu0 %990
          %994 = vset.pattern.permute.xlu0 0
          %995 = vperm.xlu0 %994, %v909
          %v996 = vpop.permute.xlu0 %995
          %999 = vset.pattern.permute.xlu0 0
          %1000 = vperm.xlu0 %999, %v910
          %v1001 = vpop.permute.xlu0 %1000
          %1004 = vset.pattern.permute.xlu0 0
          %1005 = vperm.xlu0 %1004, %v911
          %v1006 = vpop.permute.xlu0 %1005
          %v1008 = vmul.f32 %v912, %v931
          %v1009 = vmul.f32 %v913, %v936
          %v1010 = vmul.f32 %v914, %v941
          %v1011 = vmul.f32 %v915, %v946
          %v1012 = vmul.f32 %v916, %v951
          %v1013 = vmul.f32 %v917, %v956
          %v1014 = vmul.f32 %v918, %v961
          %v1015 = vmul.f32 %v919, %v966
          %v1016 = vmul.f32 %v920, %v971
          %v1017 = vmul.f32 %v921, %v976
          %v1018 = vmul.f32 %v922, %v981
          %v1019 = vmul.f32 %v923, %v986
          %v1020 = vmul.f32 %v924, %v991
          %v1021 = vmul.f32 %v925, %v996
          %v1022 = vmul.f32 %v926, %v1001
          %v1023 = vmul.f32 %v927, %v1006
          %v1024 = vld [vmem:[%s2] sm:$0xf]
          %v1025 = vld [vmem:[%s2 + $0x4] sm:$0xf]
          %v1026 = vld [vmem:[%s2 + $0x8] sm:$0xf]
          %v1027 = vld [vmem:[%s2 + $0xc] sm:$0xf]
          %v1028 = vld [vmem:[%s2 + $0x10] sm:$0xf]
          %v1029 = vld [vmem:[%s2 + $0x14] sm:$0xf]
          %v1030 = vld [vmem:[%s2 + $0x18] sm:$0xf]
          %v1031 = vld [vmem:[%s2 + $0x1c] sm:$0xf]
          %v1032 = vld [vmem:[%s2 + $0x20] sm:$0xf]
          %v1033 = vld [vmem:[%s2 + $0x24] sm:$0xf]
          %v1034 = vld [vmem:[%s2 + $0x28] sm:$0xf]
          %v1035 = vld [vmem:[%s2 + $0x2c] sm:$0xf]
          %v1036 = vld [vmem:[%s2 + $0x30] sm:$0xf]
          %v1037 = vld [vmem:[%s2 + $0x34] sm:$0xf]
          %v1038 = vld [vmem:[%s2 + $0x38] sm:$0xf]
          %v1039 = vld [vmem:[%s2 + $0x3c] sm:$0xf]
          %v1040 = vunpack.c.l.bf16 %v1024
          %v1041 = vunpack.c.l.bf16 %v1025
          %v1042 = vunpack.c.l.bf16 %v1026
          %v1043 = vunpack.c.l.bf16 %v1027
          %v1044 = vunpack.c.l.bf16 %v1028
          %v1045 = vunpack.c.l.bf16 %v1029
          %v1046 = vunpack.c.l.bf16 %v1030
          %v1047 = vunpack.c.l.bf16 %v1031
          %v1048 = vunpack.c.l.bf16 %v1032
          %v1049 = vunpack.c.l.bf16 %v1033
          %v1050 = vunpack.c.l.bf16 %v1034
          %v1051 = vunpack.c.l.bf16 %v1035
          %v1052 = vunpack.c.l.bf16 %v1036
          %v1053 = vunpack.c.l.bf16 %v1037
          %v1054 = vunpack.c.l.bf16 %v1038
          %v1055 = vunpack.c.l.bf16 %v1039
          %v1056 = vmul.f32 %v1008, %v1040
          %v1057 = vmul.f32 %v1009, %v1041
          %v1058 = vmul.f32 %v1010, %v1042
          %v1059 = vmul.f32 %v1011, %v1043
          %v1060 = vmul.f32 %v1012, %v1044
          %v1061 = vmul.f32 %v1013, %v1045
          %v1062 = vmul.f32 %v1014, %v1046
          %v1063 = vmul.f32 %v1015, %v1047
          %v1064 = vmul.f32 %v1016, %v1048
          %v1065 = vmul.f32 %v1017, %v1049
          %v1066 = vmul.f32 %v1018, %v1050
          %v1067 = vmul.f32 %v1019, %v1051
          %v1068 = vmul.f32 %v1020, %v1052
          %v1069 = vmul.f32 %v1021, %v1053
          %v1070 = vmul.f32 %v1022, %v1054
          %v1071 = vmul.f32 %v1023, %v1055
          %v1072 = vpack.c.bf16 %v1057, %v1056
          %v1073 = vpack.c.bf16 %v1059, %v1058
          %v1074 = vpack.c.bf16 %v1061, %v1060
          %v1075 = vpack.c.bf16 %v1063, %v1062
          %v1076 = vpack.c.bf16 %v1065, %v1064
          %v1077 = vpack.c.bf16 %v1067, %v1066
          %v1078 = vpack.c.bf16 %v1069, %v1068
          %v1079 = vpack.c.bf16 %v1071, %v1070
          %v1088 = vunpack.c.l.b16 %v1072
          %v1089 = vunpack.c.h.b16 %v1072
          %v1090 = vunpack.c.l.b16 %v1073
          %v1091 = vunpack.c.h.b16 %v1073
          %v1092 = vunpack.c.l.b16 %v1074
          %v1093 = vunpack.c.h.b16 %v1074
          %v1094 = vunpack.c.l.b16 %v1075
          %v1095 = vunpack.c.h.b16 %v1075
          %v1096 = vunpack.c.l.b16 %v1076
          %v1097 = vunpack.c.h.b16 %v1076
          %v1098 = vunpack.c.l.b16 %v1077
          %v1099 = vunpack.c.h.b16 %v1077
          %v1100 = vunpack.c.l.b16 %v1078
          %v1101 = vunpack.c.h.b16 %v1078
          %v1102 = vunpack.c.l.b16 %v1079
          %v1103 = vunpack.c.h.b16 %v1079
          %v1104 = vpack.c.b16 %v1088, %v1088
          %v1105 = vpack.c.b16 %v1089, %v1089
          %v1106 = vpack.c.b16 %v1090, %v1090
          %v1107 = vpack.c.b16 %v1091, %v1091
          %v1108 = vpack.c.b16 %v1092, %v1092
          %v1109 = vpack.c.b16 %v1093, %v1093
          %v1110 = vpack.c.b16 %v1094, %v1094
          %v1111 = vpack.c.b16 %v1095, %v1095
          %v1112 = vpack.c.b16 %v1096, %v1096
          %v1113 = vpack.c.b16 %v1097, %v1097
          %v1114 = vpack.c.b16 %v1098, %v1098
          %v1115 = vpack.c.b16 %v1099, %v1099
          %v1116 = vpack.c.b16 %v1100, %v1100
          %v1117 = vpack.c.b16 %v1101, %v1101
          %v1118 = vpack.c.b16 %v1102, %v1102
          %v1119 = vpack.c.b16 %v1103, %v1103
          %1136 = vst [vmem:[%s186] sm:$0xf] %v1104
          %1137 = vst [vmem:[%s186 + $0x4] sm:$0xf] %v1105
          %1138 = vst [vmem:[%s186 + $0x8] sm:$0xf] %v1106
          %1139 = vst [vmem:[%s186 + $0xc] sm:$0xf] %v1107
          %1140 = vst [vmem:[%s186 + $0x10] sm:$0xf] %v1108
          %1141 = vst [vmem:[%s186 + $0x14] sm:$0xf] %v1109
          %1142 = vst [vmem:[%s186 + $0x18] sm:$0xf] %v1110
          %1143 = vst [vmem:[%s186 + $0x1c] sm:$0xf] %v1111
          %1144 = vst [vmem:[%s186 + $0x20] sm:$0xf] %v1112
          %1145 = vst [vmem:[%s186 + $0x24] sm:$0xf] %v1113
          %1146 = vst [vmem:[%s186 + $0x28] sm:$0xf] %v1114
          %1147 = vst [vmem:[%s186 + $0x2c] sm:$0xf] %v1115
          %1148 = vst [vmem:[%s186 + $0x30] sm:$0xf] %v1116
          %1149 = vst [vmem:[%s186 + $0x34] sm:$0xf] %v1117
          %1150 = vst [vmem:[%s186 + $0x38] sm:$0xf] %v1118
          %1151 = vst [vmem:[%s186 + $0x3c] sm:$0xf] %v1119
        $region40: #{tpu_custom_call.1} parent=31 // pred_fallthru
          _
        %s1152 = sand.u32 %s107, 1
        %s1153 = scalar_lea.sflag [#allocation6], %s1152
        %s1154 = sand.u32 %s107, 1
        %s1155 = smul.addr %s1154, 64
        %s1156 = scalar_lea.vmem [#allocation5], %s1155
        // Predicated region
        $region41: #{tpu_custom_call.1} parent=31 // pred_check
          %p1157 = pneg %p117
        $region42: #{tpu_custom_call.1} parent=31 // pred_check_branch
          %1159 = sbr.rel (%p1157) target = $region44
        $region43: #{tpu_custom_call.1} parent=31 // pred_region
          %s1161 = ssub.s32 1024, 1024
          %1162 = vsyncadd %s1153, %s1161
          %s1163 = smul.addr %s21, 16
          %s1164 = smul.addr %s1163, 64
          %s1165 = scalar_lea.hbm %s3, %s1164
          %s1166 = sshll.u32 %s1156, 4
          %s1167 = int_to_ptr.vmem [resolvable:$true] %s1166
          %1172 = dma.vmem_to_hbm [thread:$0]  %s1167, 1024, %s1165, %s1153, 64, 64, 4
        $region44: #{tpu_custom_call.1} parent=31 // pred_fallthru
          _
      $region32: #{tpu_custom_call.1} parent=5 // pred_fallthru
        _
      %p1173 = scmp.le.s32.totalorder 2, %s12
      // Predicated region
      $region45: #{tpu_custom_call.1} parent=5 // pred_check
        %p1174 = pneg %p1173
      $region46: #{tpu_custom_call.1} parent=5 // pred_check_branch
        %1176 = sbr.rel (%p1174) target = $region48
      $region47: #{tpu_custom_call.1} parent=5 // pred_region
        %s1177 = ssub.s32 %s12, 2
        // Predicated region
        $region49: #{tpu_custom_call.1} parent=47 // pred_check
          %p1178 = pneg %p123
        $region50: #{tpu_custom_call.1} parent=47 // pred_check_branch
          %1180 = sbr.rel (%p1178) target = $region52
        $region51: #{tpu_custom_call.1} parent=47 // pred_region
          %s1181 = sand.u32 %s108, 1
          %s1182 = scalar_lea.sflag [#allocation6], %s1181
          %s1183 = sand.u32 %s108, 1
          %s1184 = smul.addr %s1183, 64
          %s1185 = scalar_lea.vmem [#allocation5], %s1184
          %1186 = dma.done %s1182, 1024
        $region52: #{tpu_custom_call.1} parent=47 // pred_fallthru
          _
      $region48: #{tpu_custom_call.1} parent=5 // pred_fallthru
        _
    $region6: #{tpu_custom_call.1} parent=1 // loop_footer
      %s16 = sadd.s32 1, %s12
    $region7: #{tpu_custom_call.1} parent=1 // loop_footer_branch
      %11 = sbr.rel target = $region3
    $region8: #{tpu_custom_call.1} parent=1 // loop_exit
      _
    %1187 = vsyncpa [#allocation6], 1
    %s1188 = scalar_lea.sflag [#allocation6], 1
    %1189 = vsyncpa %s1188, 1

</llo_original>
